<compile_context>
chip_gen: v5e
topology: v5e:2x2
jax: 0.10.0
libtpu: 0.0.40
codegen_flags: <defaults>
</compile_context>

<pallas_src>
import jax
import jax.numpy as jnp
from jax.experimental import pallas as pl
from jax.experimental.pallas import tpu as pltpu


def _round_up(x, m):
    return ((x + m - 1) // m) * m


def _pick_tile(dim, candidates=(512, 256, 128)):
    for c in candidates:
        if dim % c == 0:
            return c
    return dim


# ---------------------------------------------------------------------------
# Kernels
# ---------------------------------------------------------------------------

def _resident_kernel(x_ref, w1_ref, b1_ref, w2_ref, b2_ref, o_ref):
    """All weights VMEM-resident; grid = (batch tiles,).  Canonical [M,K]@[K,N]."""
    h = jnp.dot(x_ref[...], w1_ref[...], preferred_element_type=jnp.float32)
    h = jnp.tanh(h + b1_ref[...])
    out = jnp.dot(h.astype(w2_ref.dtype), w2_ref[...],
                  preferred_element_type=jnp.float32)
    o_ref[...] = (out + b2_ref[...]).astype(o_ref.dtype)


def _streamed_step(x_ref, w1_ref, b1_ref, w2_ref, acc_ref):
    """acc += tanh(x @ W1t[:, j] + b1[j]) @ W2t[j, :] for the current neuron tile."""
    h = jnp.dot(x_ref[...], w1_ref[...], preferred_element_type=jnp.float32)
    h = jnp.tanh(h + b1_ref[...])
    acc_ref[...] += jnp.dot(h.astype(w2_ref.dtype), w2_ref[...],
                            preferred_element_type=jnp.float32)


def _streamed_kernel_f32(x_ref, w1_ref, b1_ref, w2_ref, b2_ref, o_ref):
    """f32 output: accumulate directly into the (resident-across-j) output block."""
    j = pl.program_id(1)

    @pl.when(j == 0)
    def _():
        o_ref[...] = jnp.broadcast_to(b2_ref[...], o_ref.shape)

    _streamed_step(x_ref, w1_ref, b1_ref, w2_ref, o_ref)


def _streamed_kernel_acc(x_ref, w1_ref, b1_ref, w2_ref, b2_ref, o_ref, acc_ref):
    """Non-f32 output: f32 scratch accumulator, single cast at the last j step."""
    j = pl.program_id(1)

    @pl.when(j == 0)
    def _():
        acc_ref[...] = jnp.broadcast_to(b2_ref[...], acc_ref.shape)

    _streamed_step(x_ref, w1_ref, b1_ref, w2_ref, acc_ref)

    @pl.when(j == pl.num_programs(1) - 1)
    def _():
        o_ref[...] = acc_ref[...].astype(o_ref.dtype)


# ---------------------------------------------------------------------------
# Parameter prep (one-time, outside the hot path)
# ---------------------------------------------------------------------------

def prepare_head_params(w_dense, b_dense, w_out, b_out, *, param_dtype=None):
    """One-time parameter prep.

    w_dense: [4H, 4H]  (PyTorch nn.Linear [out, in]);  b_dense: [4H]
    w_out:   [L, 4H]   (PyTorch nn.Linear [out, in]);  b_out:   [L]

    * Pre-transposes both matmul weights to [in, out] so the kernel runs
      canonical [M,K] @ [K,N] matmuls (no transposed-B feed).
    * Zero-pads the label dim to a lane-dense multiple of 128.
    * Optionally casts matmul weights to `param_dtype` (e.g. bf16 to halve
      weight bandwidth).  Biases stay f32.
    """
    H4 = w_dense.shape[0]
    L = w_out.shape[0]
    Lpad = _round_up(max(L, 1), 128)

    w1t = jnp.asarray(w_dense).T                                  # [4H_in, 4H_out]
    w2t = jnp.pad(jnp.asarray(w_out).T, ((0, 0), (0, Lpad - L)))  # [4H, Lpad]
    b1 = jnp.asarray(b_dense, dtype=jnp.float32).reshape(1, H4)
    b2 = jnp.pad(jnp.asarray(b_out, dtype=jnp.float32),
                 (0, Lpad - L)).reshape(1, Lpad)
    if param_dtype is not None:
        w1t = w1t.astype(param_dtype)
        w2t = w2t.astype(param_dtype)
    return dict(w1t=w1t, b1=b1, w2t=w2t, b2=b2, num_labels=L)


def _reference_path(features, w1t, b1, w2t, b2, L, out_dtype):
    x = features.astype(w1t.dtype)
    h = jnp.tanh(jnp.dot(x, w1t, preferred_element_type=jnp.float32) + b1)
    out = jnp.dot(h.astype(w2t.dtype), w2t,
                  preferred_element_type=jnp.float32) + b2
    return out[:, :L].astype(out_dtype)


# ---------------------------------------------------------------------------
# Entry point
# ---------------------------------------------------------------------------

def roberta_multilabel_head(features, params, *, force_pallas=False,
                            _force_streamed=False):
    """features: [B, 4H]; params from prepare_head_params.  Returns [B, L]."""
    w1t, b1, w2t, b2 = params["w1t"], params["b1"], params["w2t"], params["b2"]
    L = params["num_labels"]
    B, H4 = features.shape
    Lpad = w2t.shape[1]
    out_dtype = features.dtype

    # Tiny / non-lane-aligned problems: a fused XLA GEMM beats custom-call +
    # per-grid-step overhead, so don't route them through Pallas.
    flops = 2 * B * H4 * (H4 + Lpad)
    if (H4 % 128 != 0) or (not force_pallas and flops < (1 << 22)):
        return _reference_path(features, w1t, b1, w2t, b2, L, out_dtype)

    # Per-generation VMEM budget (v5e/v6e: 128 MiB -> ~100 MiB; v7x: 64 MiB
    # -> ~51 MiB).  Fallback is the smallest (v7x) budget.
    try:
        vmem_cap = int(pltpu.get_tpu_info().vmem_capacity_bytes)
    except Exception:
        vmem_cap = 64 * 1024 * 1024
    vmem_limit = min(100 * 1024 * 1024, int(vmem_cap * 0.8))

    # Cast activations to the weight dtype ONCE here (not per grid step).
    x = features if features.dtype == w1t.dtype else features.astype(w1t.dtype)
    w_bytes = jnp.dtype(w1t.dtype).itemsize
    x_bytes = jnp.dtype(x.dtype).itemsize
    o_bytes = jnp.dtype(out_dtype).itemsize

    # Batch tile: as large as the budget allows (amortizes W1 streaming);
    # capped at 256 on the 64 MiB-VMEM generation (v7x), 512 elsewhere.
    tm_max = 512 if vmem_cap >= 96 * 1024 * 1024 else 256
    if _round_up(B, 16) <= tm_max:
        tm = _round_up(B, 16)
        B_pad = tm
    else:
        tm = 128
        B_pad = _round_up(B, 128)
        for cand in (512, 256):
            # Prefer the largest tile whose batch padding overhead is <= 1/3.
            if cand <= tm_max and _round_up(B, cand) * 3 <= 4 * B:
                tm = cand
                B_pad = _round_up(B, cand)
                break

    # Weight residency: keep ALL weights in VMEM (streamed from HBM exactly
    # once per call) if 2x (double-buffer-conservative) weights + per-tile
    # working set fit the budget.
    weight_bytes = 2 * (w1t.size + w2t.size) * w_bytes + 2 * (b1.size + b2.size) * 4
    work_bytes = (2 * tm * H4 * x_bytes        # x tile, double-buffered
                  + 2 * tm * Lpad * o_bytes    # out tile, double-buffered
                  + tm * H4 * 4                # h intermediate (f32)
                  + tm * Lpad * 4)             # accumulator (f32)
    resident = (not _force_streamed) and \
        (weight_bytes + work_bytes + (4 << 20) <= vmem_limit)

    n_btiles = B_pad // tm
    if resident and n_btiles == 1 and B >= 32:
        # Megacore fix: split the single batch tile in two so the "parallel"
        # axis has extent 2 (no extra W1 traffic -- weights stay resident).
        B_pad = _round_up(B, 32)
        tm = B_pad // 2
        n_btiles = 2

    if B_pad != B:
        x = jnp.pad(x, ((0, B_pad - B), (0, 0)))

    if resident:
        out = pl.pallas_call(
            _resident_kernel,
            out_shape=jax.ShapeDtypeStruct((B_pad, Lpad), out_dtype),
            grid=(n_btiles,),
            in_specs=[
                pl.BlockSpec((tm, H4), lambda i: (i, 0)),
                pl.BlockSpec((H4, H4), lambda i: (0, 0)),     # W1t, resident
                pl.BlockSpec((1, H4), lambda i: (0, 0)),      # b1
                pl.BlockSpec((H4, Lpad), lambda i: (0, 0)),   # W2t, resident
                pl.BlockSpec((1, Lpad), lambda i: (0, 0)),    # b2
            ],
            out_specs=pl.BlockSpec((tm, Lpad), lambda i: (i, 0)),
            compiler_params=pltpu.CompilerParams(
                dimension_semantics=("parallel",),
                vmem_limit_bytes=vmem_limit,
            ),
        )(x, w1t, b1, w2t, b2)
    else:
        tn = _pick_tile(H4)
        grid = (n_btiles, H4 // tn)
        f32_out = jnp.dtype(out_dtype) == jnp.dtype(jnp.float32)
        kernel = _streamed_kernel_f32 if f32_out else _streamed_kernel_acc
        scratch = [] if f32_out else [pltpu.VMEM((tm, Lpad), jnp.float32)]
        out = pl.pallas_call(
            kernel,
            out_shape=jax.ShapeDtypeStruct((B_pad, Lpad), out_dtype),
            grid=grid,
            in_specs=[
                # x tile resident across the j (reduction) axis.
                pl.BlockSpec((tm, H4), lambda i, j: (i, 0)),
                # W1t column tile [4H, tn] -> canonical RHS of x @ W1t.
                pl.BlockSpec((H4, tn), lambda i, j: (0, j)),
                pl.BlockSpec((1, tn), lambda i, j: (0, j)),
                # W2t row tile [tn, Lpad] -> canonical RHS of h_j @ W2t[j].
                pl.BlockSpec((tn, Lpad), lambda i, j: (j, 0)),
                pl.BlockSpec((1, Lpad), lambda i, j: (0, 0)),
            ],
            out_specs=pl.BlockSpec((tm, Lpad), lambda i, j: (i, 0)),
            scratch_shapes=scratch,
            compiler_params=pltpu.CompilerParams(
                dimension_semantics=("parallel", "arbitrary"),
                vmem_limit_bytes=vmem_limit,
            ),
        )(x, w1t, b1, w2t, b2)

    return out[:B, :L]


# ---------------------------------------------------------------------------
# Self-test
# ---------------------------------------------------------------------------

if __name__ == "__main__":
    # Make the pure-JAX reference f32-accurate so atol=1e-5 checks are fair.
    jax.config.update("jax_default_matmul_precision", "highest")

    def torch_style_ref(feats, w_dense, b_dense, w_out, b_out):
        # eval-mode dropout == identity
        return jnp.tanh(feats @ w_dense.T + b_dense) @ w_out.T + b_out

    # --- Config 1: hidden_size=32 (4H=128), 8 labels, batch=8 -------------
    hidden_size, num_labels, batch = 32, 8, 8
    H4 = hidden_size * 4
    k = jax.random.split(jax.random.PRNGKey(0), 5)
    features = jax.random.normal(k[0], (batch, H4), dtype=jnp.float32)
    w_dense = jax.random.normal(k[1], (H4, H4), dtype=jnp.float32) * 0.02
    b_dense = jax.random.normal(k[2], (H4,), dtype=jnp.float32) * 0.02
    w_out = jax.random.normal(k[3], (num_labels, H4), dtype=jnp.float32) * 0.02
    b_out = jax.random.normal(k[4], (num_labels,), dtype=jnp.float32) * 0.02
    ref = torch_style_ref(features, w_dense, b_dense, w_out, b_out)

    # f32 params, resident-weight Pallas kernel.
    p_f32 = prepare_head_params(w_dense, b_dense, w_out, b_out)
    out = jax.block_until_ready(
        roberta_multilabel_head(features, p_f32, force_pallas=True))
    assert out.shape == (batch, num_labels)
    assert jnp.allclose(out, ref, atol=1e-5, rtol=1e-5)

    # bf16 weight/activation path: loose check.
    p_bf16 = prepare_head_params(w_dense, b_dense, w_out, b_out,
                                 param_dtype=jnp.bfloat16)
    out_bf16 = jax.block_until_ready(
        roberta_multilabel_head(features, p_bf16, force_pallas=True))
    assert out_bf16.shape == (batch, num_labels)
    assert jnp.allclose(out_bf16, ref, atol=2e-2, rtol=2e-2)

    # Tiny-problem auto-dispatch (plain jnp) must also match.
    out_auto = jax.block_until_ready(roberta_multilabel_head(features, p_f32))
    assert jnp.allclose(out_auto, ref, atol=1e-5, rtol=1e-5)

    # --- Config 2: hidden_size=96 (4H=384), 5 labels, batch=40 ------------
    # Exercises: label-dim padding (5 -> 128), the small-batch megacore split
    # on the resident path (2 batch tiles of 32), and the streamed kernels
    # (forced) with a 3-step reduction over the neuron axis.
    hidden_size, num_labels, batch = 96, 5, 40
    H4 = hidden_size * 4
    k = jax.random.split(jax.random.PRNGKey(1), 5)
    features2 = jax.random.normal(k[0], (batch, H4), dtype=jnp.float32)
    w_dense2 = jax.random.normal(k[1], (H4, H4), dtype=jnp.float32) * 0.02
    b_dense2 = jax.random.normal(k[2], (H4,), dtype=jnp.float32) * 0.02
    w_out2 = jax.random.normal(k[3], (num_labels, H4), dtype=jnp.float32) * 0.02
    b_out2 = jax.random.normal(k[4], (num_labels,), dtype=jnp.float32) * 0.02
    ref2 = torch_style_ref(features2, w_dense2, b_dense2, w_out2, b_out2)

    p2 = prepare_head_params(w_dense2, b_dense2, w_out2, b_out2)
    out2 = jax.block_until_ready(
        roberta_multilabel_head(features2, p2, force_pallas=True))
    assert out2.shape == (batch, num_labels)
    assert jnp.allclose(out2, ref2, atol=1e-5, rtol=1e-5)

    # Streamed f32 path (accumulates directly into the output block).
    out2s = jax.block_until_ready(
        roberta_multilabel_head(features2, p2, force_pallas=True,
                                _force_streamed=True))
    assert jnp.allclose(out2s, ref2, atol=1e-5, rtol=1e-5)

    # Streamed non-f32-output path (bf16 features + bf16 weights -> scratch acc).
    p2_bf16 = prepare_head_params(w_dense2, b_dense2, w_out2, b_out2,
                                  param_dtype=jnp.bfloat16)
    out2b = jax.block_until_ready(
        roberta_multilabel_head(features2.astype(jnp.bfloat16), p2_bf16,
                                force_pallas=True, _force_streamed=True))
    assert out2b.shape == (batch, num_labels)
    assert jnp.allclose(out2b.astype(jnp.float32), ref2, atol=3e-2, rtol=3e-2)

    print("KERNEL_OK")
</pallas_src>

<mosaic_0001>
module attributes {stable_mosaic.version = 11 : i64} {
  func.func @_resident_kernel(%arg0: i32, %arg1: memref<16x128xf32, #tpu.memory_space<vmem>>, %arg2: memref<128x128xf32, #tpu.memory_space<vmem>>, %arg3: memref<1x128xf32, #tpu.memory_space<vmem>>, %arg4: memref<128x128xf32, #tpu.memory_space<vmem>>, %arg5: memref<1x128xf32, #tpu.memory_space<vmem>>, %arg6: memref<16x128xf32, #tpu.memory_space<vmem>>) attributes {dimension_semantics = [#tpu.dimension_semantics<parallel>], iteration_bounds = array<i64: 1>, scalar_prefetch = 0 : i64, scratch_operands = 0 : i64, tpu.core_type = #tpu.core_type<tc>, window_params = [{transform_indices = @transform_0, window_bounds = array<i64: 16, 128>}, {pipeline_mode = #tpu.pipeline_mode<synchronous>, transform_indices = @transform_1, window_bounds = array<i64: 128, 128>}, {pipeline_mode = #tpu.pipeline_mode<synchronous>, transform_indices = @transform_2, window_bounds = array<i64: 1, 128>}, {pipeline_mode = #tpu.pipeline_mode<synchronous>, transform_indices = @transform_3, window_bounds = array<i64: 128, 128>}, {pipeline_mode = #tpu.pipeline_mode<synchronous>, transform_indices = @transform_4, window_bounds = array<i64: 1, 128>}, {transform_indices = @transform_5, window_bounds = array<i64: 16, 128>}]} {
    %c0 = arith.constant 0 : index
    %c0_0 = arith.constant 0 : index
    %0 = vector.load %arg1[%c0, %c0_0] : memref<16x128xf32, #tpu.memory_space<vmem>>, vector<16x128xf32>
    %c0_1 = arith.constant 0 : index
    %c0_2 = arith.constant 0 : index
    %1 = vector.load %arg2[%c0_1, %c0_2] : memref<128x128xf32, #tpu.memory_space<vmem>>, vector<128x128xf32>
    %cst = arith.constant dense<0.000000e+00> : vector<16x128xf32>
    %2 = tpu.matmul %0, %1, %cst {dimension_numbers = #tpu.dot_dimension_numbers<[1], [0], [0], [1], [0, 0, 1, 1], [], []>, precision = #tpu.contract_precision<fp32>} : vector<16x128xf32>, vector<128x128xf32>, vector<16x128xf32> -> vector<16x128xf32>
    %c0_3 = arith.constant 0 : index
    %c0_4 = arith.constant 0 : index
    %3 = vector.load %arg3[%c0_3, %c0_4] : memref<1x128xf32, #tpu.memory_space<vmem>>, vector<1x128xf32>
    %4 = vector.broadcast %3 : vector<1x128xf32> to vector<16x128xf32>
    %5 = arith.addf %2, %4 : vector<16x128xf32>
    %6 = math.tanh %5 : vector<16x128xf32>
    %c0_5 = arith.constant 0 : index
    %c0_6 = arith.constant 0 : index
    %7 = vector.load %arg4[%c0_5, %c0_6] : memref<128x128xf32, #tpu.memory_space<vmem>>, vector<128x128xf32>
    %cst_7 = arith.constant dense<0.000000e+00> : vector<16x128xf32>
    %8 = tpu.matmul %6, %7, %cst_7 {dimension_numbers = #tpu.dot_dimension_numbers<[1], [0], [0], [1], [0, 0, 1, 1], [], []>, precision = #tpu.contract_precision<fp32>} : vector<16x128xf32>, vector<128x128xf32>, vector<16x128xf32> -> vector<16x128xf32>
    %c0_8 = arith.constant 0 : index
    %c0_9 = arith.constant 0 : index
    %9 = vector.load %arg5[%c0_8, %c0_9] : memref<1x128xf32, #tpu.memory_space<vmem>>, vector<1x128xf32>
    %10 = vector.broadcast %9 : vector<1x128xf32> to vector<16x128xf32>
    %11 = arith.addf %8, %10 : vector<16x128xf32>
    %c0_10 = arith.constant 0 : index
    %c0_11 = arith.constant 0 : index
    %12 = vector.load %arg6[%c0_10, %c0_11] : memref<16x128xf32, #tpu.memory_space<vmem>>, vector<16x128xf32>
    tpu.vector_store %arg6[%c0_10, %c0_11], %11 {strides = array<i32>} : memref<16x128xf32, #tpu.memory_space<vmem>>, vector<16x128xf32>,
    return
  }
  func.func @transform_0(%arg0: i32) -> (i32, i32) {
    %c0_i32 = arith.constant 0 : i32
    %c0_i32_0 = arith.constant 0 : i32
    return %arg0, %c0_i32 : i32, i32
  }
  func.func @transform_1(%arg0: i32) -> (i32, i32) {
    %c0_i32 = arith.constant 0 : i32
    %c0_i32_0 = arith.constant 0 : i32
    %c0_i32_1 = arith.constant 0 : i32
    return %c0_i32, %c0_i32_0 : i32, i32
  }
  func.func @transform_2(%arg0: i32) -> (i32, i32) {
    %c0_i32 = arith.constant 0 : i32
    %c0_i32_0 = arith.constant 0 : i32
    %c0_i32_1 = arith.constant 0 : i32
    return %c0_i32, %c0_i32_0 : i32, i32
  }
  func.func @transform_3(%arg0: i32) -> (i32, i32) {
    %c0_i32 = arith.constant 0 : i32
    %c0_i32_0 = arith.constant 0 : i32
    %c0_i32_1 = arith.constant 0 : i32
    return %c0_i32, %c0_i32_0 : i32, i32
  }
  func.func @transform_4(%arg0: i32) -> (i32, i32) {
    %c0_i32 = arith.constant 0 : i32
    %c0_i32_0 = arith.constant 0 : i32
    %c0_i32_1 = arith.constant 0 : i32
    return %c0_i32, %c0_i32_0 : i32, i32
  }
  func.func @transform_5(%arg0: i32) -> (i32, i32) {
    %c0_i32 = arith.constant 0 : i32
    %c0_i32_0 = arith.constant 0 : i32
    return %arg0, %c0_i32 : i32, i32
  }
}

</mosaic_0001>

<llo_original>
// kernel: tpu_custom_call.1
$region0: #{tpu_custom_call.1}
  #allocation0 [shape = 'u32[]', space=smem, size = 0x4, offset = 0x4, fixed_abs, tag = 'smem constant byte address 0x4 - core index']
  #allocation1 [shape = 'u32[72,128]{1,0:T(1,128)}', space=vmem, size = 0x9000, scoped, tag = 'internal scratch']
  %s0 = inlined_call_operand.hbm [shape: f32[16,128], index: 0, kind: input, shape index: {}]
  %s1 = inlined_call_operand.hbm [shape: f32[128,128], index: 1, kind: input, shape index: {}]
  %s2 = inlined_call_operand.vmem [shape: f32[1,128], index: 2, kind: input, shape index: {}]
  %s3 = inlined_call_operand.hbm [shape: f32[128,128], index: 3, kind: input, shape index: {}]
  %s4 = inlined_call_operand.vmem [shape: f32[1,128], index: 4, kind: input, shape index: {}]
  %s5 = inlined_call_operand.hbm [shape: f32[16,128], index: 5, kind: output, shape index: {}]
  %s6 = sld [smem:[#allocation0]]
  $region42: #{tpu_custom_call.1} parent=0
    _
  %s8 = ssub.s32 1, %s6
  %s9 = scalar_select 0, %s8, %s6
  $region1: #{tpu_custom_call.1} parent=0
    #allocation2 [shape = 'u8[8192]{0}', space=vmem, size = 0x2000, scoped, tag = 'input window, operand 0, single buffered']
    #allocation3 [shape = 's32[1]{0}', space=sflag, size = 0x4, scoped, tag = 'scoped memory for tpu_custom_call.1']
    #allocation4 [shape = 's32[1]{0}', space=sflag, size = 0x4, scoped, tag = 'scoped memory for tpu_custom_call.1']
    #allocation5 [shape = 'u8[65536]{0}', space=vmem, size = 0x10000, scoped, tag = 'input window, operand 1, single buffered']
    #allocation6 [shape = 's32[1]{0}', space=sflag, size = 0x4, scoped, tag = 'scoped memory for tpu_custom_call.1']
    #allocation7 [shape = 'u8[65536]{0}', space=vmem, size = 0x10000, scoped, tag = 'input window, operand 3, single buffered']
    #allocation8 [shape = 'u8[8192]{0}', space=vmem, size = 0x2000, scoped, tag = 'output window, operand 0, single buffered']
    %10 = vsyncpa [#allocation3], 0
    %11 = vsyncpa [#allocation6], 0
    %12 = vsyncpa [#allocation4], 0
    // Predicated region
    $region2: #{tpu_custom_call.1} parent=1 // pred_check
      _
    $region3: #{tpu_custom_call.1} parent=1 // pred_check_branch
      %14 = sbr.rel (0) target = $region5
    $region4: #{tpu_custom_call.1} parent=1 // pred_region
      %16 = vsyncadd [#allocation3], 0
      %s17 = sshll.u32 %s0, 4
      %s18 = int_to_ptr.hbm [resolvable:$true] %s17
      %s19 = sshll.u32 [#allocation2], 4
      %s20 = int_to_ptr.vmem [resolvable:$true] %s19
      %25 = dma.hbm_to_vmem [thread:$0]  %s18, 256, %s20, [#allocation3], 128, 128, 8
    $region5: #{tpu_custom_call.1} parent=1 // pred_fallthru
      _
    // Predicated region
    $region6: #{tpu_custom_call.1} parent=1 // pred_check
      _
    $region7: #{tpu_custom_call.1} parent=1 // pred_check_branch
      %27 = sbr.rel (0) target = $region9
    $region8: #{tpu_custom_call.1} parent=1 // pred_region
      %29 = vsyncadd [#allocation6], 0
      %s30 = sshll.u32 %s1, 4
      %s31 = int_to_ptr.hbm [resolvable:$true] %s30
      %s32 = sshll.u32 [#allocation5], 4
      %s33 = int_to_ptr.vmem [resolvable:$true] %s32
      %38 = dma.hbm_to_vmem [thread:$0]  %s31, 2048, %s33, [#allocation6], 128, 128, 8
    $region9: #{tpu_custom_call.1} parent=1 // pred_fallthru
      _
    // Predicated region
    $region10: #{tpu_custom_call.1} parent=1 // pred_check
      _
    $region11: #{tpu_custom_call.1} parent=1 // pred_check_branch
      %40 = sbr.rel (0) target = $region13
    $region12: #{tpu_custom_call.1} parent=1 // pred_region
      _
    $region13: #{tpu_custom_call.1} parent=1 // pred_fallthru
      _
    // Predicated region
    $region14: #{tpu_custom_call.1} parent=1 // pred_check
      _
    $region15: #{tpu_custom_call.1} parent=1 // pred_check_branch
      %42 = sbr.rel (0) target = $region17
    $region16: #{tpu_custom_call.1} parent=1 // pred_region
      %44 = vsyncadd [#allocation6], 0
      %s45 = sshll.u32 %s3, 4
      %s46 = int_to_ptr.hbm [resolvable:$true] %s45
      %s47 = sshll.u32 [#allocation7], 4
      %s48 = int_to_ptr.vmem [resolvable:$true] %s47
      %53 = dma.hbm_to_vmem [thread:$0]  %s46, 2048, %s48, [#allocation6], 128, 128, 8
    $region17: #{tpu_custom_call.1} parent=1 // pred_fallthru
      _
    // Predicated region
    $region18: #{tpu_custom_call.1} parent=1 // pred_check
      _
    $region19: #{tpu_custom_call.1} parent=1 // pred_check_branch
      %55 = sbr.rel (0) target = $region21
    $region20: #{tpu_custom_call.1} parent=1 // pred_region
      _
    $region21: #{tpu_custom_call.1} parent=1 // pred_fallthru
      _
    // Predicated region
    $region22: #{tpu_custom_call.1} parent=1 // pred_check
      _
    $region23: #{tpu_custom_call.1} parent=1 // pred_check_branch
      %57 = sbr.rel (0) target = $region25
    $region24: #{tpu_custom_call.1} parent=1 // pred_region
      %59 = dma.done [#allocation3], 256
    $region25: #{tpu_custom_call.1} parent=1 // pred_fallthru
      _
    // Predicated region
    $region26: #{tpu_custom_call.1} parent=1 // pred_check
      _
    $region27: #{tpu_custom_call.1} parent=1 // pred_check_branch
      %61 = sbr.rel (0) target = $region29
    $region28: #{tpu_custom_call.1} parent=1 // pred_region
      %63 = dma.done [#allocation6], 2048
    $region29: #{tpu_custom_call.1} parent=1 // pred_fallthru
      _
    // Predicated region
    $region30: #{tpu_custom_call.1} parent=1 // pred_check
      _
    $region31: #{tpu_custom_call.1} parent=1 // pred_check_branch
      %65 = sbr.rel (0) target = $region33
    $region32: #{tpu_custom_call.1} parent=1 // pred_region
      %67 = dma.done [#allocation6], 2048
    $region33: #{tpu_custom_call.1} parent=1 // pred_fallthru
      _
    %v68 = vld [vmem:[#allocation2] sm:$0xff]
    %v69 = vld [vmem:[#allocation2 + $0x8] sm:$0xff]
    %v70 = vld [vmem:[#allocation5] sm:$0xff]
    %v71 = vld [vmem:[#allocation5 + $0x8] sm:$0xff]
    %v72 = vld [vmem:[#allocation5 + $0x10] sm:$0xff]
    %v73 = vld [vmem:[#allocation5 + $0x18] sm:$0xff]
    %v74 = vld [vmem:[#allocation5 + $0x20] sm:$0xff]
    %v75 = vld [vmem:[#allocation5 + $0x28] sm:$0xff]
    %v76 = vld [vmem:[#allocation5 + $0x30] sm:$0xff]
    %v77 = vld [vmem:[#allocation5 + $0x38] sm:$0xff]
    %v78 = vld [vmem:[#allocation5 + $0x40] sm:$0xff]
    %v79 = vld [vmem:[#allocation5 + $0x48] sm:$0xff]
    %v80 = vld [vmem:[#allocation5 + $0x50] sm:$0xff]
    %v81 = vld [vmem:[#allocation5 + $0x58] sm:$0xff]
    %v82 = vld [vmem:[#allocation5 + $0x60] sm:$0xff]
    %v83 = vld [vmem:[#allocation5 + $0x68] sm:$0xff]
    %v84 = vld [vmem:[#allocation5 + $0x70] sm:$0xff]
    %v85 = vld [vmem:[#allocation5 + $0x78] sm:$0xff]
    %v86 = vld [vmem:[%s2] sm:$0x1]
    %v88 = vperm.slane %v86, 0
    %v90 = vand.u32 %v85, 4294901760
    %91 = vmatpush.msra.mxu0 %v90
    %v92 = vand.u32 %v84, 4294901760
    %93 = vmatpush.msra.mxu0 %v92
    %v94 = vand.u32 %v83, 4294901760
    %95 = vmatpush.msra.mxu0 %v94
    %v96 = vand.u32 %v82, 4294901760
    %97 = vmatpush.msra.mxu0 %v96
    %v98 = vand.u32 %v81, 4294901760
    %99 = vmatpush.msra.mxu0 %v98
    %v100 = vand.u32 %v80, 4294901760
    %101 = vmatpush.msra.mxu0 %v100
    %v102 = vand.u32 %v79, 4294901760
    %103 = vmatpush.msra.mxu0 %v102
    %v104 = vand.u32 %v78, 4294901760
    %105 = vmatpush.msra.mxu0 %v104
    %v106 = vand.u32 %v77, 4294901760
    %107 = vmatpush.msra.mxu0 %v106
    %v108 = vand.u32 %v76, 4294901760
    %109 = vmatpush.msra.mxu0 %v108
    %v110 = vand.u32 %v75, 4294901760
    %111 = vmatpush.msra.mxu0 %v110
    %v112 = vand.u32 %v74, 4294901760
    %113 = vmatpush.msra.mxu0 %v112
    %v114 = vand.u32 %v73, 4294901760
    %115 = vmatpush.msra.mxu0 %v114
    %v116 = vand.u32 %v72, 4294901760
    %117 = vmatpush.msra.mxu0 %v116
    %v118 = vand.u32 %v71, 4294901760
    %119 = vmatpush.msra.mxu0 %v118
    %v120 = vand.u32 %v70, 4294901760
    %121 = vmatpush.msra.mxu0 %v120
    %v122 = vand.u32 %v68, 4294901760
    %v123 = vsub.f32 %v68, %v122
    %v124 = vand.u32 %v123, 4294901760
    %v125 = vsub.f32 %v123, %v124
    %v126 = vand.u32 %v125, 4294901760
    %127 = vmatmul.f32.gmra.mxu0 %v126
    %v128 = vpop.f32.mrf.mxu0
    %v129 = vadd.f32 %v88, %v128
    %v130 = vand.u32 %v69, 4294901760
    %v131 = vsub.f32 %v69, %v130
    %v132 = vand.u32 %v131, 4294901760
    %v133 = vsub.f32 %v131, %v132
    %v134 = vand.u32 %v133, 4294901760
    %135 = vmatmul.f32.gmra.mxu0 %v134
    %v136 = vpop.f32.mrf.mxu0
    %v137 = vadd.f32 %v88, %v136
    %138 = vdwg.mxu0
    %v139 = vand.u32 %v85, 4294901760
    %v140 = vsub.f32 %v85, %v139
    %v141 = vand.u32 %v140, 4294901760
    %v142 = vsub.f32 %v140, %v141
    %v143 = vand.u32 %v142, 4294901760
    %144 = vmatpush.msra.mxu0 %v143
    %v145 = vand.u32 %v84, 4294901760
    %v146 = vsub.f32 %v84, %v145
    %v147 = vand.u32 %v146, 4294901760
    %v148 = vsub.f32 %v146, %v147
    %v149 = vand.u32 %v148, 4294901760
    %150 = vmatpush.msra.mxu0 %v149
    %v151 = vand.u32 %v83, 4294901760
    %v152 = vsub.f32 %v83, %v151
    %v153 = vand.u32 %v152, 4294901760
    %v154 = vsub.f32 %v152, %v153
    %v155 = vand.u32 %v154, 4294901760
    %156 = vmatpush.msra.mxu0 %v155
    %v157 = vand.u32 %v82, 4294901760
    %v158 = vsub.f32 %v82, %v157
    %v159 = vand.u32 %v158, 4294901760
    %v160 = vsub.f32 %v158, %v159
    %v161 = vand.u32 %v160, 4294901760
    %162 = vmatpush.msra.mxu0 %v161
    %v163 = vand.u32 %v81, 4294901760
    %v164 = vsub.f32 %v81, %v163
    %v165 = vand.u32 %v164, 4294901760
    %v166 = vsub.f32 %v164, %v165
    %v167 = vand.u32 %v166, 4294901760
    %168 = vmatpush.msra.mxu0 %v167
    %v169 = vand.u32 %v80, 4294901760
    %v170 = vsub.f32 %v80, %v169
    %v171 = vand.u32 %v170, 4294901760
    %v172 = vsub.f32 %v170, %v171
    %v173 = vand.u32 %v172, 4294901760
    %174 = vmatpush.msra.mxu0 %v173
    %v175 = vand.u32 %v79, 4294901760
    %v176 = vsub.f32 %v79, %v175
    %v177 = vand.u32 %v176, 4294901760
    %v178 = vsub.f32 %v176, %v177
    %v179 = vand.u32 %v178, 4294901760
    %180 = vmatpush.msra.mxu0 %v179
    %v181 = vand.u32 %v78, 4294901760
    %v182 = vsub.f32 %v78, %v181
    %v183 = vand.u32 %v182, 4294901760
    %v184 = vsub.f32 %v182, %v183
    %v185 = vand.u32 %v184, 4294901760
    %186 = vmatpush.msra.mxu0 %v185
    %v187 = vand.u32 %v77, 4294901760
    %v188 = vsub.f32 %v77, %v187
    %v189 = vand.u32 %v188, 4294901760
    %v190 = vsub.f32 %v188, %v189
    %v191 = vand.u32 %v190, 4294901760
    %192 = vmatpush.msra.mxu0 %v191
    %v193 = vand.u32 %v76, 4294901760
    %v194 = vsub.f32 %v76, %v193
    %v195 = vand.u32 %v194, 4294901760
    %v196 = vsub.f32 %v194, %v195
    %v197 = vand.u32 %v196, 4294901760
    %198 = vmatpush.msra.mxu0 %v197
    %v199 = vand.u32 %v75, 4294901760
    %v200 = vsub.f32 %v75, %v199
    %v201 = vand.u32 %v200, 4294901760
    %v202 = vsub.f32 %v200, %v201
    %v203 = vand.u32 %v202, 4294901760
    %204 = vmatpush.msra.mxu0 %v203
    %v205 = vand.u32 %v74, 4294901760
    %v206 = vsub.f32 %v74, %v205
    %v207 = vand.u32 %v206, 4294901760
    %v208 = vsub.f32 %v206, %v207
    %v209 = vand.u32 %v208, 4294901760
    %210 = vmatpush.msra.mxu0 %v209
    %v211 = vand.u32 %v73, 4294901760
    %v212 = vsub.f32 %v73, %v211
    %v213 = vand.u32 %v212, 4294901760
    %v214 = vsub.f32 %v212, %v213
    %v215 = vand.u32 %v214, 4294901760
    %216 = vmatpush.msra.mxu0 %v215
    %v217 = vand.u32 %v72, 4294901760
    %v218 = vsub.f32 %v72, %v217
    %v219 = vand.u32 %v218, 4294901760
    %v220 = vsub.f32 %v218, %v219
    %v221 = vand.u32 %v220, 4294901760
    %222 = vmatpush.msra.mxu0 %v221
    %v223 = vand.u32 %v71, 4294901760
    %v224 = vsub.f32 %v71, %v223
    %v225 = vand.u32 %v224, 4294901760
    %v226 = vsub.f32 %v224, %v225
    %v227 = vand.u32 %v226, 4294901760
    %228 = vmatpush.msra.mxu0 %v227
    %v229 = vand.u32 %v70, 4294901760
    %v230 = vsub.f32 %v70, %v229
    %v231 = vand.u32 %v230, 4294901760
    %v232 = vsub.f32 %v230, %v231
    %v233 = vand.u32 %v232, 4294901760
    %234 = vmatpush.msra.mxu0 %v233
    %v235 = vand.u32 %v68, 4294901760
    %236 = vmatmul.f32.gmra.mxu0 %v235
    %v237 = vpop.f32.mrf.mxu0
    %v238 = vadd.f32 %v129, %v237
    %v239 = vand.u32 %v69, 4294901760
    %240 = vmatmul.f32.gmra.mxu0 %v239
    %v241 = vpop.f32.mrf.mxu0
    %v242 = vadd.f32 %v137, %v241
    %243 = vdwg.mxu0
    %v244 = vand.u32 %v85, 4294901760
    %v245 = vsub.f32 %v85, %v244
    %246 = vmatpush.msra.mxu0 %v245
    %v247 = vand.u32 %v84, 4294901760
    %v248 = vsub.f32 %v84, %v247
    %249 = vmatpush.msra.mxu0 %v248
    %v250 = vand.u32 %v83, 4294901760
    %v251 = vsub.f32 %v83, %v250
    %252 = vmatpush.msra.mxu0 %v251
    %v253 = vand.u32 %v82, 4294901760
    %v254 = vsub.f32 %v82, %v253
    %255 = vmatpush.msra.mxu0 %v254
    %v256 = vand.u32 %v81, 4294901760
    %v257 = vsub.f32 %v81, %v256
    %258 = vmatpush.msra.mxu0 %v257
    %v259 = vand.u32 %v80, 4294901760
    %v260 = vsub.f32 %v80, %v259
    %261 = vmatpush.msra.mxu0 %v260
    %v262 = vand.u32 %v79, 4294901760
    %v263 = vsub.f32 %v79, %v262
    %264 = vmatpush.msra.mxu0 %v263
    %v265 = vand.u32 %v78, 4294901760
    %v266 = vsub.f32 %v78, %v265
    %267 = vmatpush.msra.mxu0 %v266
    %v268 = vand.u32 %v77, 4294901760
    %v269 = vsub.f32 %v77, %v268
    %270 = vmatpush.msra.mxu0 %v269
    %v271 = vand.u32 %v76, 4294901760
    %v272 = vsub.f32 %v76, %v271
    %273 = vmatpush.msra.mxu0 %v272
    %v274 = vand.u32 %v75, 4294901760
    %v275 = vsub.f32 %v75, %v274
    %276 = vmatpush.msra.mxu0 %v275
    %v277 = vand.u32 %v74, 4294901760
    %v278 = vsub.f32 %v74, %v277
    %279 = vmatpush.msra.mxu0 %v278
    %v280 = vand.u32 %v73, 4294901760
    %v281 = vsub.f32 %v73, %v280
    %282 = vmatpush.msra.mxu0 %v281
    %v283 = vand.u32 %v72, 4294901760
    %v284 = vsub.f32 %v72, %v283
    %285 = vmatpush.msra.mxu0 %v284
    %v286 = vand.u32 %v71, 4294901760
    %v287 = vsub.f32 %v71, %v286
    %288 = vmatpush.msra.mxu0 %v287
    %v289 = vand.u32 %v70, 4294901760
    %v290 = vsub.f32 %v70, %v289
    %291 = vmatpush.msra.mxu0 %v290
    %v292 = vand.u32 %v68, 4294901760
    %v293 = vsub.f32 %v68, %v292
    %294 = vmatmul.f32.gmra.mxu0 %v293
    %v295 = vpop.f32.mrf.mxu0
    %v296 = vadd.f32 %v238, %v295
    %v297 = vand.u32 %v69, 4294901760
    %v298 = vsub.f32 %v69, %v297
    %299 = vmatmul.f32.gmra.mxu0 %v298
    %v300 = vpop.f32.mrf.mxu0
    %v301 = vadd.f32 %v242, %v300
    %302 = vdwg.mxu0
    %v303 = vand.u32 %v85, 4294901760
    %304 = vmatpush.msra.mxu0 %v303
    %v305 = vand.u32 %v84, 4294901760
    %306 = vmatpush.msra.mxu0 %v305
    %v307 = vand.u32 %v83, 4294901760
    %308 = vmatpush.msra.mxu0 %v307
    %v309 = vand.u32 %v82, 4294901760
    %310 = vmatpush.msra.mxu0 %v309
    %v311 = vand.u32 %v81, 4294901760
    %312 = vmatpush.msra.mxu0 %v311
    %v313 = vand.u32 %v80, 4294901760
    %314 = vmatpush.msra.mxu0 %v313
    %v315 = vand.u32 %v79, 4294901760
    %316 = vmatpush.msra.mxu0 %v315
    %v317 = vand.u32 %v78, 4294901760
    %318 = vmatpush.msra.mxu0 %v317
    %v319 = vand.u32 %v77, 4294901760
    %320 = vmatpush.msra.mxu0 %v319
    %v321 = vand.u32 %v76, 4294901760
    %322 = vmatpush.msra.mxu0 %v321
    %v323 = vand.u32 %v75, 4294901760
    %324 = vmatpush.msra.mxu0 %v323
    %v325 = vand.u32 %v74, 4294901760
    %326 = vmatpush.msra.mxu0 %v325
    %v327 = vand.u32 %v73, 4294901760
    %328 = vmatpush.msra.mxu0 %v327
    %v329 = vand.u32 %v72, 4294901760
    %330 = vmatpush.msra.mxu0 %v329
    %v331 = vand.u32 %v71, 4294901760
    %332 = vmatpush.msra.mxu0 %v331
    %v333 = vand.u32 %v70, 4294901760
    %334 = vmatpush.msra.mxu0 %v333
    %v335 = vand.u32 %v68, 4294901760
    %v336 = vsub.f32 %v68, %v335
    %v337 = vand.u32 %v336, 4294901760
    %338 = vmatmul.f32.gmra.mxu0 %v337
    %v339 = vpop.f32.mrf.mxu0
    %v340 = vadd.f32 %v296, %v339
    %v341 = vand.u32 %v69, 4294901760
    %v342 = vsub.f32 %v69, %v341
    %v343 = vand.u32 %v342, 4294901760
    %344 = vmatmul.f32.gmra.mxu0 %v343
    %v345 = vpop.f32.mrf.mxu0
    %v346 = vadd.f32 %v301, %v345
    %347 = vdwg.mxu0
    %v348 = vand.u32 %v85, 4294901760
    %v349 = vsub.f32 %v85, %v348
    %v350 = vand.u32 %v349, 4294901760
    %351 = vmatpush.msra.mxu0 %v350
    %v352 = vand.u32 %v84, 4294901760
    %v353 = vsub.f32 %v84, %v352
    %v354 = vand.u32 %v353, 4294901760
    %355 = vmatpush.msra.mxu0 %v354
    %v356 = vand.u32 %v83, 4294901760
    %v357 = vsub.f32 %v83, %v356
    %v358 = vand.u32 %v357, 4294901760
    %359 = vmatpush.msra.mxu0 %v358
    %v360 = vand.u32 %v82, 4294901760
    %v361 = vsub.f32 %v82, %v360
    %v362 = vand.u32 %v361, 4294901760
    %363 = vmatpush.msra.mxu0 %v362
    %v364 = vand.u32 %v81, 4294901760
    %v365 = vsub.f32 %v81, %v364
    %v366 = vand.u32 %v365, 4294901760
    %367 = vmatpush.msra.mxu0 %v366
    %v368 = vand.u32 %v80, 4294901760
    %v369 = vsub.f32 %v80, %v368
    %v370 = vand.u32 %v369, 4294901760
    %371 = vmatpush.msra.mxu0 %v370
    %v372 = vand.u32 %v79, 4294901760
    %v373 = vsub.f32 %v79, %v372
    %v374 = vand.u32 %v373, 4294901760
    %375 = vmatpush.msra.mxu0 %v374
    %v376 = vand.u32 %v78, 4294901760
    %v377 = vsub.f32 %v78, %v376
    %v378 = vand.u32 %v377, 4294901760
    %379 = vmatpush.msra.mxu0 %v378
    %v380 = vand.u32 %v77, 4294901760
    %v381 = vsub.f32 %v77, %v380
    %v382 = vand.u32 %v381, 4294901760
    %383 = vmatpush.msra.mxu0 %v382
    %v384 = vand.u32 %v76, 4294901760
    %v385 = vsub.f32 %v76, %v384
    %v386 = vand.u32 %v385, 4294901760
    %387 = vmatpush.msra.mxu0 %v386
    %v388 = vand.u32 %v75, 4294901760
    %v389 = vsub.f32 %v75, %v388
    %v390 = vand.u32 %v389, 4294901760
    %391 = vmatpush.msra.mxu0 %v390
    %v392 = vand.u32 %v74, 4294901760
    %v393 = vsub.f32 %v74, %v392
    %v394 = vand.u32 %v393, 4294901760
    %395 = vmatpush.msra.mxu0 %v394
    %v396 = vand.u32 %v73, 4294901760
    %v397 = vsub.f32 %v73, %v396
    %v398 = vand.u32 %v397, 4294901760
    %399 = vmatpush.msra.mxu0 %v398
    %v400 = vand.u32 %v72, 4294901760
    %v401 = vsub.f32 %v72, %v400
    %v402 = vand.u32 %v401, 4294901760
    %403 = vmatpush.msra.mxu0 %v402
    %v404 = vand.u32 %v71, 4294901760
    %v405 = vsub.f32 %v71, %v404
    %v406 = vand.u32 %v405, 4294901760
    %407 = vmatpush.msra.mxu0 %v406
    %v408 = vand.u32 %v70, 4294901760
    %v409 = vsub.f32 %v70, %v408
    %v410 = vand.u32 %v409, 4294901760
    %411 = vmatpush.msra.mxu0 %v410
    %v412 = vand.u32 %v68, 4294901760
    %413 = vmatmul.f32.gmra.mxu0 %v412
    %v414 = vpop.f32.mrf.mxu0
    %v415 = vadd.f32 %v340, %v414
    %v416 = vand.u32 %v69, 4294901760
    %417 = vmatmul.f32.gmra.mxu0 %v416
    %v418 = vpop.f32.mrf.mxu0
    %v419 = vadd.f32 %v346, %v418
    %420 = vdwg.mxu0
    %v421 = vand.u32 %v85, 4294901760
    %422 = vmatpush.msra.mxu0 %v421
    %v423 = vand.u32 %v84, 4294901760
    %424 = vmatpush.msra.mxu0 %v423
    %v425 = vand.u32 %v83, 4294901760
    %426 = vmatpush.msra.mxu0 %v425
    %v427 = vand.u32 %v82, 4294901760
    %428 = vmatpush.msra.mxu0 %v427
    %v429 = vand.u32 %v81, 4294901760
    %430 = vmatpush.msra.mxu0 %v429
    %v431 = vand.u32 %v80, 4294901760
    %432 = vmatpush.msra.mxu0 %v431
    %v433 = vand.u32 %v79, 4294901760
    %434 = vmatpush.msra.mxu0 %v433
    %v435 = vand.u32 %v78, 4294901760
    %436 = vmatpush.msra.mxu0 %v435
    %v437 = vand.u32 %v77, 4294901760
    %438 = vmatpush.msra.mxu0 %v437
    %v439 = vand.u32 %v76, 4294901760
    %440 = vmatpush.msra.mxu0 %v439
    %v441 = vand.u32 %v75, 4294901760
    %442 = vmatpush.msra.mxu0 %v441
    %v443 = vand.u32 %v74, 4294901760
    %444 = vmatpush.msra.mxu0 %v443
    %v445 = vand.u32 %v73, 4294901760
    %446 = vmatpush.msra.mxu0 %v445
    %v447 = vand.u32 %v72, 4294901760
    %448 = vmatpush.msra.mxu0 %v447
    %v449 = vand.u32 %v71, 4294901760
    %450 = vmatpush.msra.mxu0 %v449
    %v451 = vand.u32 %v70, 4294901760
    %452 = vmatpush.msra.mxu0 %v451
    %v453 = vand.u32 %v68, 4294901760
    %454 = vmatmul.f32.gmra.mxu0 %v453
    %v455 = vpop.f32.mrf.mxu0
    %v456 = vadd.f32 %v415, %v455
    %v457 = vand.u32 %v69, 4294901760
    %458 = vmatmul.f32.gmra.mxu0 %v457
    %v459 = vpop.f32.mrf.mxu0
    %v460 = vadd.f32 %v419, %v459
    %461 = vdwg.mxu0
    %v462 = vtanh.pop %v456
    %v463 = vtanh.pop %v460
    %v464 = vld [vmem:[#allocation7] sm:$0xff]
    %v465 = vld [vmem:[#allocation7 + $0x8] sm:$0xff]
    %v466 = vld [vmem:[#allocation7 + $0x10] sm:$0xff]
    %v467 = vld [vmem:[#allocation7 + $0x18] sm:$0xff]
    %v468 = vld [vmem:[#allocation7 + $0x20] sm:$0xff]
    %v469 = vld [vmem:[#allocation7 + $0x28] sm:$0xff]
    %v470 = vld [vmem:[#allocation7 + $0x30] sm:$0xff]
    %v471 = vld [vmem:[#allocation7 + $0x38] sm:$0xff]
    %v472 = vld [vmem:[#allocation7 + $0x40] sm:$0xff]
    %v473 = vld [vmem:[#allocation7 + $0x48] sm:$0xff]
    %v474 = vld [vmem:[#allocation7 + $0x50] sm:$0xff]
    %v475 = vld [vmem:[#allocation7 + $0x58] sm:$0xff]
    %v476 = vld [vmem:[#allocation7 + $0x60] sm:$0xff]
    %v477 = vld [vmem:[#allocation7 + $0x68] sm:$0xff]
    %v478 = vld [vmem:[#allocation7 + $0x70] sm:$0xff]
    %v479 = vld [vmem:[#allocation7 + $0x78] sm:$0xff]
    %v480 = vld [vmem:[%s4] sm:$0x1]
    %v482 = vperm.slane %v480, 0
    %v484 = vand.u32 %v479, 4294901760
    %485 = vmatpush.msra.mxu0 %v484
    %v486 = vand.u32 %v478, 4294901760
    %487 = vmatpush.msra.mxu0 %v486
    %v488 = vand.u32 %v477, 4294901760
    %489 = vmatpush.msra.mxu0 %v488
    %v490 = vand.u32 %v476, 4294901760
    %491 = vmatpush.msra.mxu0 %v490
    %v492 = vand.u32 %v475, 4294901760
    %493 = vmatpush.msra.mxu0 %v492
    %v494 = vand.u32 %v474, 4294901760
    %495 = vmatpush.msra.mxu0 %v494
    %v496 = vand.u32 %v473, 4294901760
    %497 = vmatpush.msra.mxu0 %v496
    %v498 = vand.u32 %v472, 4294901760
    %499 = vmatpush.msra.mxu0 %v498
    %v500 = vand.u32 %v471, 4294901760
    %501 = vmatpush.msra.mxu0 %v500
    %v502 = vand.u32 %v470, 4294901760
    %503 = vmatpush.msra.mxu0 %v502
    %v504 = vand.u32 %v469, 4294901760
    %505 = vmatpush.msra.mxu0 %v504
    %v506 = vand.u32 %v468, 4294901760
    %507 = vmatpush.msra.mxu0 %v506
    %v508 = vand.u32 %v467, 4294901760
    %509 = vmatpush.msra.mxu0 %v508
    %v510 = vand.u32 %v466, 4294901760
    %511 = vmatpush.msra.mxu0 %v510
    %v512 = vand.u32 %v465, 4294901760
    %513 = vmatpush.msra.mxu0 %v512
    %v514 = vand.u32 %v464, 4294901760
    %515 = vmatpush.msra.mxu0 %v514
    %v516 = vand.u32 %v462, 4294901760
    %v517 = vsub.f32 %v462, %v516
    %v518 = vand.u32 %v517, 4294901760
    %v519 = vsub.f32 %v517, %v518
    %v520 = vand.u32 %v519, 4294901760
    %521 = vmatmul.f32.gmra.mxu0 %v520
    %v522 = vpop.f32.mrf.mxu0
    %v523 = vadd.f32 %v482, %v522
    %v524 = vand.u32 %v463, 4294901760
    %v525 = vsub.f32 %v463, %v524
    %v526 = vand.u32 %v525, 4294901760
    %v527 = vsub.f32 %v525, %v526
    %v528 = vand.u32 %v527, 4294901760
    %529 = vmatmul.f32.gmra.mxu0 %v528
    %v530 = vpop.f32.mrf.mxu0
    %v531 = vadd.f32 %v482, %v530
    %532 = vdwg.mxu0
    %v533 = vand.u32 %v479, 4294901760
    %v534 = vsub.f32 %v479, %v533
    %v535 = vand.u32 %v534, 4294901760
    %v536 = vsub.f32 %v534, %v535
    %v537 = vand.u32 %v536, 4294901760
    %538 = vmatpush.msra.mxu0 %v537
    %v539 = vand.u32 %v478, 4294901760
    %v540 = vsub.f32 %v478, %v539
    %v541 = vand.u32 %v540, 4294901760
    %v542 = vsub.f32 %v540, %v541
    %v543 = vand.u32 %v542, 4294901760
    %544 = vmatpush.msra.mxu0 %v543
    %v545 = vand.u32 %v477, 4294901760
    %v546 = vsub.f32 %v477, %v545
    %v547 = vand.u32 %v546, 4294901760
    %v548 = vsub.f32 %v546, %v547
    %v549 = vand.u32 %v548, 4294901760
    %550 = vmatpush.msra.mxu0 %v549
    %v551 = vand.u32 %v476, 4294901760
    %v552 = vsub.f32 %v476, %v551
    %v553 = vand.u32 %v552, 4294901760
    %v554 = vsub.f32 %v552, %v553
    %v555 = vand.u32 %v554, 4294901760
    %556 = vmatpush.msra.mxu0 %v555
    %v557 = vand.u32 %v475, 4294901760
    %v558 = vsub.f32 %v475, %v557
    %v559 = vand.u32 %v558, 4294901760
    %v560 = vsub.f32 %v558, %v559
    %v561 = vand.u32 %v560, 4294901760
    %562 = vmatpush.msra.mxu0 %v561
    %v563 = vand.u32 %v474, 4294901760
    %v564 = vsub.f32 %v474, %v563
    %v565 = vand.u32 %v564, 4294901760
    %v566 = vsub.f32 %v564, %v565
    %v567 = vand.u32 %v566, 4294901760
    %568 = vmatpush.msra.mxu0 %v567
    %v569 = vand.u32 %v473, 4294901760
    %v570 = vsub.f32 %v473, %v569
    %v571 = vand.u32 %v570, 4294901760
    %v572 = vsub.f32 %v570, %v571
    %v573 = vand.u32 %v572, 4294901760
    %574 = vmatpush.msra.mxu0 %v573
    %v575 = vand.u32 %v472, 4294901760
    %v576 = vsub.f32 %v472, %v575
    %v577 = vand.u32 %v576, 4294901760
    %v578 = vsub.f32 %v576, %v577
    %v579 = vand.u32 %v578, 4294901760
    %580 = vmatpush.msra.mxu0 %v579
    %v581 = vand.u32 %v471, 4294901760
    %v582 = vsub.f32 %v471, %v581
    %v583 = vand.u32 %v582, 4294901760
    %v584 = vsub.f32 %v582, %v583
    %v585 = vand.u32 %v584, 4294901760
    %586 = vmatpush.msra.mxu0 %v585
    %v587 = vand.u32 %v470, 4294901760
    %v588 = vsub.f32 %v470, %v587
    %v589 = vand.u32 %v588, 4294901760
    %v590 = vsub.f32 %v588, %v589
    %v591 = vand.u32 %v590, 4294901760
    %592 = vmatpush.msra.mxu0 %v591
    %v593 = vand.u32 %v469, 4294901760
    %v594 = vsub.f32 %v469, %v593
    %v595 = vand.u32 %v594, 4294901760
    %v596 = vsub.f32 %v594, %v595
    %v597 = vand.u32 %v596, 4294901760
    %598 = vmatpush.msra.mxu0 %v597
    %v599 = vand.u32 %v468, 4294901760
    %v600 = vsub.f32 %v468, %v599
    %v601 = vand.u32 %v600, 4294901760
    %v602 = vsub.f32 %v600, %v601
    %v603 = vand.u32 %v602, 4294901760
    %604 = vmatpush.msra.mxu0 %v603
    %v605 = vand.u32 %v467, 4294901760
    %v606 = vsub.f32 %v467, %v605
    %v607 = vand.u32 %v606, 4294901760
    %v608 = vsub.f32 %v606, %v607
    %v609 = vand.u32 %v608, 4294901760
    %610 = vmatpush.msra.mxu0 %v609
    %v611 = vand.u32 %v466, 4294901760
    %v612 = vsub.f32 %v466, %v611
    %v613 = vand.u32 %v612, 4294901760
    %v614 = vsub.f32 %v612, %v613
    %v615 = vand.u32 %v614, 4294901760
    %616 = vmatpush.msra.mxu0 %v615
    %v617 = vand.u32 %v465, 4294901760
    %v618 = vsub.f32 %v465, %v617
    %v619 = vand.u32 %v618, 4294901760
    %v620 = vsub.f32 %v618, %v619
    %v621 = vand.u32 %v620, 4294901760
    %622 = vmatpush.msra.mxu0 %v621
    %v623 = vand.u32 %v464, 4294901760
    %v624 = vsub.f32 %v464, %v623
    %v625 = vand.u32 %v624, 4294901760
    %v626 = vsub.f32 %v624, %v625
    %v627 = vand.u32 %v626, 4294901760
    %628 = vmatpush.msra.mxu0 %v627
    %v629 = vand.u32 %v462, 4294901760
    %630 = vmatmul.f32.gmra.mxu0 %v629
    %v631 = vpop.f32.mrf.mxu0
    %v632 = vadd.f32 %v523, %v631
    %v633 = vand.u32 %v463, 4294901760
    %634 = vmatmul.f32.gmra.mxu0 %v633
    %v635 = vpop.f32.mrf.mxu0
    %v636 = vadd.f32 %v531, %v635
    %637 = vdwg.mxu0
    %v638 = vand.u32 %v479, 4294901760
    %v639 = vsub.f32 %v479, %v638
    %640 = vmatpush.msra.mxu0 %v639
    %v641 = vand.u32 %v478, 4294901760
    %v642 = vsub.f32 %v478, %v641
    %643 = vmatpush.msra.mxu0 %v642
    %v644 = vand.u32 %v477, 4294901760
    %v645 = vsub.f32 %v477, %v644
    %646 = vmatpush.msra.mxu0 %v645
    %v647 = vand.u32 %v476, 4294901760
    %v648 = vsub.f32 %v476, %v647
    %649 = vmatpush.msra.mxu0 %v648
    %v650 = vand.u32 %v475, 4294901760
    %v651 = vsub.f32 %v475, %v650
    %652 = vmatpush.msra.mxu0 %v651
    %v653 = vand.u32 %v474, 4294901760
    %v654 = vsub.f32 %v474, %v653
    %655 = vmatpush.msra.mxu0 %v654
    %v656 = vand.u32 %v473, 4294901760
    %v657 = vsub.f32 %v473, %v656
    %658 = vmatpush.msra.mxu0 %v657
    %v659 = vand.u32 %v472, 4294901760
    %v660 = vsub.f32 %v472, %v659
    %661 = vmatpush.msra.mxu0 %v660
    %v662 = vand.u32 %v471, 4294901760
    %v663 = vsub.f32 %v471, %v662
    %664 = vmatpush.msra.mxu0 %v663
    %v665 = vand.u32 %v470, 4294901760
    %v666 = vsub.f32 %v470, %v665
    %667 = vmatpush.msra.mxu0 %v666
    %v668 = vand.u32 %v469, 4294901760
    %v669 = vsub.f32 %v469, %v668
    %670 = vmatpush.msra.mxu0 %v669
    %v671 = vand.u32 %v468, 4294901760
    %v672 = vsub.f32 %v468, %v671
    %673 = vmatpush.msra.mxu0 %v672
    %v674 = vand.u32 %v467, 4294901760
    %v675 = vsub.f32 %v467, %v674
    %676 = vmatpush.msra.mxu0 %v675
    %v677 = vand.u32 %v466, 4294901760
    %v678 = vsub.f32 %v466, %v677
    %679 = vmatpush.msra.mxu0 %v678
    %v680 = vand.u32 %v465, 4294901760
    %v681 = vsub.f32 %v465, %v680
    %682 = vmatpush.msra.mxu0 %v681
    %v683 = vand.u32 %v464, 4294901760
    %v684 = vsub.f32 %v464, %v683
    %685 = vmatpush.msra.mxu0 %v684
    %v686 = vand.u32 %v462, 4294901760
    %v687 = vsub.f32 %v462, %v686
    %688 = vmatmul.f32.gmra.mxu0 %v687
    %v689 = vpop.f32.mrf.mxu0
    %v690 = vadd.f32 %v632, %v689
    %v691 = vand.u32 %v463, 4294901760
    %v692 = vsub.f32 %v463, %v691
    %693 = vmatmul.f32.gmra.mxu0 %v692
    %v694 = vpop.f32.mrf.mxu0
    %v695 = vadd.f32 %v636, %v694
    %696 = vdwg.mxu0
    %v697 = vand.u32 %v479, 4294901760
    %698 = vmatpush.msra.mxu0 %v697
    %v699 = vand.u32 %v478, 4294901760
    %700 = vmatpush.msra.mxu0 %v699
    %v701 = vand.u32 %v477, 4294901760
    %702 = vmatpush.msra.mxu0 %v701
    %v703 = vand.u32 %v476, 4294901760
    %704 = vmatpush.msra.mxu0 %v703
    %v705 = vand.u32 %v475, 4294901760
    %706 = vmatpush.msra.mxu0 %v705
    %v707 = vand.u32 %v474, 4294901760
    %708 = vmatpush.msra.mxu0 %v707
    %v709 = vand.u32 %v473, 4294901760
    %710 = vmatpush.msra.mxu0 %v709
    %v711 = vand.u32 %v472, 4294901760
    %712 = vmatpush.msra.mxu0 %v711
    %v713 = vand.u32 %v471, 4294901760
    %714 = vmatpush.msra.mxu0 %v713
    %v715 = vand.u32 %v470, 4294901760
    %716 = vmatpush.msra.mxu0 %v715
    %v717 = vand.u32 %v469, 4294901760
    %718 = vmatpush.msra.mxu0 %v717
    %v719 = vand.u32 %v468, 4294901760
    %720 = vmatpush.msra.mxu0 %v719
    %v721 = vand.u32 %v467, 4294901760
    %722 = vmatpush.msra.mxu0 %v721
    %v723 = vand.u32 %v466, 4294901760
    %724 = vmatpush.msra.mxu0 %v723
    %v725 = vand.u32 %v465, 4294901760
    %726 = vmatpush.msra.mxu0 %v725
    %v727 = vand.u32 %v464, 4294901760
    %728 = vmatpush.msra.mxu0 %v727
    %v729 = vand.u32 %v462, 4294901760
    %v730 = vsub.f32 %v462, %v729
    %v731 = vand.u32 %v730, 4294901760
    %732 = vmatmul.f32.gmra.mxu0 %v731
    %v733 = vpop.f32.mrf.mxu0
    %v734 = vadd.f32 %v690, %v733
    %v735 = vand.u32 %v463, 4294901760
    %v736 = vsub.f32 %v463, %v735
    %v737 = vand.u32 %v736, 4294901760
    %738 = vmatmul.f32.gmra.mxu0 %v737
    %v739 = vpop.f32.mrf.mxu0
    %v740 = vadd.f32 %v695, %v739
    %741 = vdwg.mxu0
    %v742 = vand.u32 %v479, 4294901760
    %v743 = vsub.f32 %v479, %v742
    %v744 = vand.u32 %v743, 4294901760
    %745 = vmatpush.msra.mxu0 %v744
    %v746 = vand.u32 %v478, 4294901760
    %v747 = vsub.f32 %v478, %v746
    %v748 = vand.u32 %v747, 4294901760
    %749 = vmatpush.msra.mxu0 %v748
    %v750 = vand.u32 %v477, 4294901760
    %v751 = vsub.f32 %v477, %v750
    %v752 = vand.u32 %v751, 4294901760
    %753 = vmatpush.msra.mxu0 %v752
    %v754 = vand.u32 %v476, 4294901760
    %v755 = vsub.f32 %v476, %v754
    %v756 = vand.u32 %v755, 4294901760
    %757 = vmatpush.msra.mxu0 %v756
    %v758 = vand.u32 %v475, 4294901760
    %v759 = vsub.f32 %v475, %v758
    %v760 = vand.u32 %v759, 4294901760
    %761 = vmatpush.msra.mxu0 %v760
    %v762 = vand.u32 %v474, 4294901760
    %v763 = vsub.f32 %v474, %v762
    %v764 = vand.u32 %v763, 4294901760
    %765 = vmatpush.msra.mxu0 %v764
    %v766 = vand.u32 %v473, 4294901760
    %v767 = vsub.f32 %v473, %v766
    %v768 = vand.u32 %v767, 4294901760
    %769 = vmatpush.msra.mxu0 %v768
    %v770 = vand.u32 %v472, 4294901760
    %v771 = vsub.f32 %v472, %v770
    %v772 = vand.u32 %v771, 4294901760
    %773 = vmatpush.msra.mxu0 %v772
    %v774 = vand.u32 %v471, 4294901760
    %v775 = vsub.f32 %v471, %v774
    %v776 = vand.u32 %v775, 4294901760
    %777 = vmatpush.msra.mxu0 %v776
    %v778 = vand.u32 %v470, 4294901760
    %v779 = vsub.f32 %v470, %v778
    %v780 = vand.u32 %v779, 4294901760
    %781 = vmatpush.msra.mxu0 %v780
    %v782 = vand.u32 %v469, 4294901760
    %v783 = vsub.f32 %v469, %v782
    %v784 = vand.u32 %v783, 4294901760
    %785 = vmatpush.msra.mxu0 %v784
    %v786 = vand.u32 %v468, 4294901760
    %v787 = vsub.f32 %v468, %v786
    %v788 = vand.u32 %v787, 4294901760
    %789 = vmatpush.msra.mxu0 %v788
    %v790 = vand.u32 %v467, 4294901760
    %v791 = vsub.f32 %v467, %v790
    %v792 = vand.u32 %v791, 4294901760
    %793 = vmatpush.msra.mxu0 %v792
    %v794 = vand.u32 %v466, 4294901760
    %v795 = vsub.f32 %v466, %v794
    %v796 = vand.u32 %v795, 4294901760
    %797 = vmatpush.msra.mxu0 %v796
    %v798 = vand.u32 %v465, 4294901760
    %v799 = vsub.f32 %v465, %v798
    %v800 = vand.u32 %v799, 4294901760
    %801 = vmatpush.msra.mxu0 %v800
    %v802 = vand.u32 %v464, 4294901760
    %v803 = vsub.f32 %v464, %v802
    %v804 = vand.u32 %v803, 4294901760
    %805 = vmatpush.msra.mxu0 %v804
    %v806 = vand.u32 %v462, 4294901760
    %807 = vmatmul.f32.gmra.mxu0 %v806
    %v808 = vpop.f32.mrf.mxu0
    %v809 = vadd.f32 %v734, %v808
    %v810 = vand.u32 %v463, 4294901760
    %811 = vmatmul.f32.gmra.mxu0 %v810
    %v812 = vpop.f32.mrf.mxu0
    %v813 = vadd.f32 %v740, %v812
    %814 = vdwg.mxu0
    %v815 = vand.u32 %v479, 4294901760
    %816 = vmatpush.msra.mxu0 %v815
    %v817 = vand.u32 %v478, 4294901760
    %818 = vmatpush.msra.mxu0 %v817
    %v819 = vand.u32 %v477, 4294901760
    %820 = vmatpush.msra.mxu0 %v819
    %v821 = vand.u32 %v476, 4294901760
    %822 = vmatpush.msra.mxu0 %v821
    %v823 = vand.u32 %v475, 4294901760
    %824 = vmatpush.msra.mxu0 %v823
    %v825 = vand.u32 %v474, 4294901760
    %826 = vmatpush.msra.mxu0 %v825
    %v827 = vand.u32 %v473, 4294901760
    %828 = vmatpush.msra.mxu0 %v827
    %v829 = vand.u32 %v472, 4294901760
    %830 = vmatpush.msra.mxu0 %v829
    %v831 = vand.u32 %v471, 4294901760
    %832 = vmatpush.msra.mxu0 %v831
    %v833 = vand.u32 %v470, 4294901760
    %834 = vmatpush.msra.mxu0 %v833
    %v835 = vand.u32 %v469, 4294901760
    %836 = vmatpush.msra.mxu0 %v835
    %v837 = vand.u32 %v468, 4294901760
    %838 = vmatpush.msra.mxu0 %v837
    %v839 = vand.u32 %v467, 4294901760
    %840 = vmatpush.msra.mxu0 %v839
    %v841 = vand.u32 %v466, 4294901760
    %842 = vmatpush.msra.mxu0 %v841
    %v843 = vand.u32 %v465, 4294901760
    %844 = vmatpush.msra.mxu0 %v843
    %v845 = vand.u32 %v464, 4294901760
    %846 = vmatpush.msra.mxu0 %v845
    %v847 = vand.u32 %v462, 4294901760
    %848 = vmatmul.f32.gmra.mxu0 %v847
    %v849 = vpop.f32.mrf.mxu0
    %v850 = vadd.f32 %v809, %v849
    %v851 = vand.u32 %v463, 4294901760
    %852 = vmatmul.f32.gmra.mxu0 %v851
    %v853 = vpop.f32.mrf.mxu0
    %v854 = vadd.f32 %v813, %v853
    %855 = vdwg.mxu0
    %856 = vst [vmem:[#allocation8] sm:$0xff] %v850
    %857 = vst [vmem:[#allocation8 + $0x8] sm:$0xff] %v854
    // Predicated region
    $region34: #{tpu_custom_call.1} parent=1 // pred_check
      _
    $region35: #{tpu_custom_call.1} parent=1 // pred_check_branch
      %859 = sbr.rel (0) target = $region37
    $region36: #{tpu_custom_call.1} parent=1 // pred_region
      %861 = vsyncadd [#allocation4], 0
      %s862 = sshll.u32 [#allocation8], 4
      %s863 = int_to_ptr.vmem [resolvable:$true] %s862
      %s864 = sshll.u32 %s5, 4
      %s865 = int_to_ptr.hbm [resolvable:$true] %s864
      %870 = dma.vmem_to_hbm [thread:$0]  %s863, 256, %s865, [#allocation4], 128, 128, 8
    $region37: #{tpu_custom_call.1} parent=1 // pred_fallthru
      _
    // Predicated region
    $region38: #{tpu_custom_call.1} parent=1 // pred_check
      _
    $region39: #{tpu_custom_call.1} parent=1 // pred_check_branch
      %872 = sbr.rel (0) target = $region41
    $region40: #{tpu_custom_call.1} parent=1 // pred_region
      %874 = dma.done [#allocation4], 256
    $region41: #{tpu_custom_call.1} parent=1 // pred_fallthru
      _
    %875 = vsyncpa [#allocation3], 1
    %876 = vsyncpa [#allocation6], 1
    %877 = vsyncpa [#allocation4], 1

</llo_original>
